<compile_context>
chip_gen: v7x
topology: tpu7x:2x2x1
jax: 0.10.0
libtpu: 0.0.40
codegen_flags: <defaults>
</compile_context>

<pallas_src>
import functools

import jax
import jax.numpy as jnp
from jax.experimental import pallas as pl
from jax.experimental.pallas import tpu as pltpu

_MIB = 1 << 20


def _round_up(x, m):
    return (x + m - 1) // m * m


def _vmem_capacity_bytes():
    """Physical per-core VMEM; conservative 64 MiB (v7x) if the query fails."""
    try:
        return int(pltpu.get_tpu_info().vmem_capacity_bytes)
    except Exception:
        return 64 * _MIB


# ---------------------------------------------------------------------------
# Parameter prep (hoisted out of the per-call path; run once at load time)
# ---------------------------------------------------------------------------
def prepare_swiglu_params(w1, b1, w2, b2, *, weight_dtype=jnp.bfloat16):
    """Split / transpose / cast PyTorch-layout weights once.

    w1: (2F, D) fc1 weight, b1: (2F,), w2: (D, F) fc2 weight, b2: (D,).
    """
    two_f, d = w1.shape
    f = two_f // 2
    return dict(
        w1g=jnp.transpose(w1[:f, :]).astype(weight_dtype),   # (D, F)
        w1v=jnp.transpose(w1[f:, :]).astype(weight_dtype),   # (D, F)
        b1g=b1[:f].reshape(1, f).astype(jnp.float32),        # (1, F)
        b1v=b1[f:].reshape(1, f).astype(jnp.float32),        # (1, F)
        w2t=jnp.transpose(w2).astype(weight_dtype),          # (F, D)
        b2=b2.reshape(1, d).astype(jnp.float32),             # (1, D)
    )


# ---------------------------------------------------------------------------
# Kernels
# ---------------------------------------------------------------------------
def _make_resident_kernel(f_chunks, compute_dtype, acc_into_out):
    """Weights resident in VMEM; hidden dim chunked in-kernel (static slices)."""

    def _body(x_ref, w1g_ref, b1g_ref, w1v_ref, b1v_ref, w2_ref, b2_ref, acc_ref):
        x = x_ref[...].astype(compute_dtype)                          # (tm, D) bf16, VPU cast
        acc_ref[...] = jnp.broadcast_to(b2_ref[...], acc_ref.shape)   # init with fc2 bias
        for f0, fs in f_chunks:                                       # static unroll
            g = jnp.dot(x, w1g_ref[:, f0:f0 + fs],
                        preferred_element_type=jnp.float32) + b1g_ref[:, f0:f0 + fs]
            v = jnp.dot(x, w1v_ref[:, f0:f0 + fs],
                        preferred_element_type=jnp.float32) + b1v_ref[:, f0:f0 + fs]
            h = (g * jax.nn.sigmoid(g)) * v                           # SiLU(gate) * value, f32
            acc_ref[...] += jnp.dot(h.astype(compute_dtype), w2_ref[f0:f0 + fs, :],
                                    preferred_element_type=jnp.float32)

    if acc_into_out:
        def kernel(x_ref, w1g_ref, b1g_ref, w1v_ref, b1v_ref, w2_ref, b2_ref, o_ref):
            _body(x_ref, w1g_ref, b1g_ref, w1v_ref, b1v_ref, w2_ref, b2_ref, o_ref)
    else:
        def kernel(x_ref, w1g_ref, b1g_ref, w1v_ref, b1v_ref, w2_ref, b2_ref,
                   o_ref, acc_ref):
            _body(x_ref, w1g_ref, b1g_ref, w1v_ref, b1v_ref, w2_ref, b2_ref, acc_ref)
            o_ref[...] = acc_ref[...].astype(o_ref.dtype)
    return kernel


def _make_streaming_kernel(compute_dtype, acc_into_out):
    """Fallback: grid = (M tiles, F tiles); F is a reduction axis."""

    def _step(x_ref, w1g_ref, b1g_ref, w1v_ref, b1v_ref, w2_ref, b2_ref, acc_ref):
        @pl.when(pl.program_id(1) == 0)
        def _init():
            acc_ref[...] = jnp.broadcast_to(b2_ref[...], acc_ref.shape)
        x = x_ref[...].astype(compute_dtype)
        g = jnp.dot(x, w1g_ref[...], preferred_element_type=jnp.float32) + b1g_ref[...]
        v = jnp.dot(x, w1v_ref[...], preferred_element_type=jnp.float32) + b1v_ref[...]
        h = (g * jax.nn.sigmoid(g)) * v
        acc_ref[...] += jnp.dot(h.astype(compute_dtype), w2_ref[...],
                                preferred_element_type=jnp.float32)

    if acc_into_out:
        def kernel(x_ref, w1g_ref, b1g_ref, w1v_ref, b1v_ref, w2_ref, b2_ref, o_ref):
            _step(x_ref, w1g_ref, b1g_ref, w1v_ref, b1v_ref, w2_ref, b2_ref, o_ref)
        needs_scratch = False
    else:
        def kernel(x_ref, w1g_ref, b1g_ref, w1v_ref, b1v_ref, w2_ref, b2_ref,
                   o_ref, acc_ref):
            _step(x_ref, w1g_ref, b1g_ref, w1v_ref, b1v_ref, w2_ref, b2_ref, acc_ref)

            @pl.when(pl.program_id(1) == pl.num_programs(1) - 1)
            def _store():
                o_ref[...] = acc_ref[...].astype(o_ref.dtype)
        needs_scratch = True
    return kernel, needs_scratch


def _pick_streaming_tf(f, target):
    """Largest 128-multiple tile <= target dividing (possibly padded) F."""
    target = max(128, (int(target) // 128) * 128)
    f_pad = _round_up(f, 128)
    tf = 128
    for cand in range(target, 127, -128):
        if f_pad % cand == 0:
            tf = cand
            break
    return tf, f_pad


# ---------------------------------------------------------------------------
# Wrapper
# ---------------------------------------------------------------------------
def swiglu_ffn_fused(x, params, *, tile_m=None, tile_f=512,
                     compute_dtype=jnp.bfloat16, out_dtype=None,
                     force_streaming=False):
    """Pallas SwiGLUFFNFused forward.

    x: (B, N, D).  params: output of prepare_swiglu_params().
    tile_m=None picks the largest token tile fitting the per-generation VMEM
    budget; tile_f bounds the hidden-dim chunk (in-kernel chunk for the
    resident path, grid tile for the streaming fallback).
    """
    B, N, D = x.shape
    w1g, w1v = params["w1g"], params["w1v"]
    b1g, b1v = params["b1g"], params["b1v"]
    w2t, b2 = params["w2t"], params["b2"]
    assert w1g.shape[0] == D and w2t.shape[1] == D
    F = w1g.shape[1]
    M = B * N

    out_dtype = jnp.dtype(out_dtype if out_dtype is not None else x.dtype)
    cdt = jnp.dtype(compute_dtype)
    xbytes = jnp.dtype(x.dtype).itemsize
    obytes = out_dtype.itemsize
    wbytes = jnp.dtype(w1g.dtype).itemsize

    # f32 outputs accumulate directly into o_ref (resident across the reduction).
    acc_into_out = out_dtype == jnp.dtype(jnp.float32)

    # Sublane alignment for the (tm, D) activation blocks.
    sub = 8
    if xbytes == 2 or obytes == 2:
        sub = 16
    if xbytes == 1 or obytes == 1:
        sub = 32

    # Per-generation scoped-VMEM budget: ~102 MiB on 128 MiB chips (v5e/v6e),
    # ~51 MiB on v7x (64 MiB physical) -> headroom for compiler scratch.
    budget = int(_vmem_capacity_bytes() * 0.8)

    def resident_est(tm, tf_in):
        return (2 * 3 * D * F * wbytes + 2 * (2 * F + D) * 4   # weights + biases (2 bufs)
                + 2 * tm * D * xbytes                          # x tiles (native dtype)
                + 2 * tm * D * obytes                          # out tiles
                + (0 if acc_into_out else tm * D * 4)          # f32 accumulator scratch
                + tm * D * cdt.itemsize                        # in-kernel bf16 copy of x
                + 4 * tm * tf_in * 4)                          # gate/val/hidden f32 temps

    def streaming_est(tm, tf):
        return (2 * 3 * D * tf * wbytes + 2 * (2 * tf + D) * 4
                + 2 * tm * D * xbytes + 2 * tm * D * obytes
                + (0 if acc_into_out else tm * D * 4)
                + tm * D * cdt.itemsize
                + 4 * tm * tf * 4)

    def pick_tm(est_fn, tf_val):
        cap_tm = max(sub, _round_up(M, sub))
        cands = sorted({min(_round_up(c, sub), cap_tm)
                        for c in (1024, 768, 512, 384, 256, 192, 128, 96, 64, 48, 32, 16, 8)},
                       reverse=True)
        for tm in cands:
            if est_fn(tm, tf_val) <= budget:
                # >= 2 token tiles: shards the "parallel" axis across v7x's two
                # TensorCores and overlaps x/out DMA with compute elsewhere.
                if M > 2 * sub and -(-M // tm) < 2:
                    tm = _round_up(-(-M // 2), sub)
                return tm
        return None

    x2d = x.reshape(M, D)

    # ---------------- weights-resident fast path ----------------
    tf_in = min(F, max(128, int(tile_f)))          # bounds live f32 intermediates
    tm = None
    if not force_streaming:
        if tile_m is not None:
            tm = max(sub, _round_up(min(int(tile_m), _round_up(M, sub)), sub))
            if resident_est(tm, tf_in) > budget:
                tm = None
        else:
            tm = pick_tm(resident_est, tf_in)

    if tm is not None:
        f_chunks = tuple((f0, min(tf_in, F - f0)) for f0 in range(0, F, tf_in))
        grid_m = -(-M // tm)
        est = resident_est(tm, tf_in)
        vmem_limit = int(min(budget, max(est + 8 * _MIB, 32 * _MIB)))
        cost = pl.CostEstimate(
            flops=int(6 * M * D * F),                # 2*M*D*2F (fc1) + 2*M*F*D (fc2)
            transcendentals=int(M * F),              # sigmoid
            bytes_accessed=int(M * D * (xbytes + obytes)
                               + 3 * D * F * wbytes + (2 * F + D) * 4))
        kernel = _make_resident_kernel(f_chunks, cdt, acc_into_out)
        out2d = pl.pallas_call(
            kernel,
            out_shape=jax.ShapeDtypeStruct((M, D), out_dtype),
            grid_spec=pltpu.PrefetchScalarGridSpec(
                num_scalar_prefetch=0,
                grid=(grid_m,),
                in_specs=[
                    pl.BlockSpec((tm, D), lambda i: (i, 0)),   # x tile
                    pl.BlockSpec((D, F), lambda i: (0, 0)),    # w1 gate  (resident)
                    pl.BlockSpec((1, F), lambda i: (0, 0)),    # b1 gate  (resident)
                    pl.BlockSpec((D, F), lambda i: (0, 0)),    # w1 value (resident)
                    pl.BlockSpec((1, F), lambda i: (0, 0)),    # b1 value (resident)
                    pl.BlockSpec((F, D), lambda i: (0, 0)),    # w2       (resident)
                    pl.BlockSpec((1, D), lambda i: (0, 0)),    # b2       (resident)
                ],
                out_specs=pl.BlockSpec((tm, D), lambda i: (i, 0)),
                scratch_shapes=([] if acc_into_out
                                else [pltpu.VMEM((tm, D), jnp.float32)]),
            ),
            compiler_params=pltpu.CompilerParams(
                dimension_semantics=("parallel",),
                vmem_limit_bytes=vmem_limit),
            cost_estimate=cost,
        )(x2d, w1g, b1g, w1v, b1v, w2t, b2)
        return out2d.reshape(B, N, D)

    # ---------------- streaming fallback (weights too large for VMEM) ----------------
    tf, F_pad = _pick_streaming_tf(F, tile_f)
    if F_pad != F:
        # Awkward hidden dim: zero-pad F once; padded w2 rows are zero so the
        # extra hidden columns contribute nothing.
        pf = F_pad - F
        w1g = jnp.pad(w1g, ((0, 0), (0, pf)))
        w1v = jnp.pad(w1v, ((0, 0), (0, pf)))
        b1g = jnp.pad(b1g, ((0, 0), (0, pf)))
        b1v = jnp.pad(b1v, ((0, 0), (0, pf)))
        w2t = jnp.pad(w2t, ((0, pf), (0, 0)))

    if tile_m is not None:
        tm = max(sub, _round_up(min(int(tile_m), _round_up(M, sub)), sub))
    else:
        tm = pick_tm(streaming_est, tf)
    if tm is None or streaming_est(tm, tf) > budget:
        raise ValueError("SwiGLU FFN tiles do not fit the VMEM budget; "
                         "reduce tile_m / tile_f.")

    grid_m = -(-M // tm)
    grid = (grid_m, F_pad // tf)
    kernel, needs_scratch = _make_streaming_kernel(cdt, acc_into_out)
    est = streaming_est(tm, tf)
    vmem_limit = int(min(budget, max(est + 8 * _MIB, 32 * _MIB)))
    cost = pl.CostEstimate(
        flops=int(6 * M * D * F_pad),
        transcendentals=int(M * F_pad),
        # weights are re-streamed once per M tile on this path
        bytes_accessed=int(M * D * (xbytes + obytes)
                           + grid_m * (3 * D * F_pad * wbytes + (2 * F_pad + D) * 4)))
    out2d = pl.pallas_call(
        kernel,
        out_shape=jax.ShapeDtypeStruct((M, D), out_dtype),
        grid_spec=pltpu.PrefetchScalarGridSpec(
            num_scalar_prefetch=0,
            grid=grid,
            in_specs=[
                pl.BlockSpec((tm, D), lambda i, k: (i, 0)),    # x tile (const over k)
                pl.BlockSpec((D, tf), lambda i, k: (0, k)),    # w1 gate slice
                pl.BlockSpec((1, tf), lambda i, k: (0, k)),    # b1 gate slice
                pl.BlockSpec((D, tf), lambda i, k: (0, k)),    # w1 value slice
                pl.BlockSpec((1, tf), lambda i, k: (0, k)),    # b1 value slice
                pl.BlockSpec((tf, D), lambda i, k: (k, 0)),    # w2 slice
                pl.BlockSpec((1, D), lambda i, k: (0, 0)),     # b2 (constant)
            ],
            out_specs=pl.BlockSpec((tm, D), lambda i, k: (i, 0)),
            scratch_shapes=([pltpu.VMEM((tm, D), jnp.float32)] if needs_scratch else []),
        ),
        compiler_params=pltpu.CompilerParams(
            dimension_semantics=("parallel", "arbitrary"),
            vmem_limit_bytes=vmem_limit),
        cost_estimate=cost,
    )(x2d, w1g, b1g, w1v, b1v, w2t, b2)
    return out2d.reshape(B, N, D)


# ---------------------------------------------------------------------------
# References
# ---------------------------------------------------------------------------
def _reference(x, w1, b1, w2, b2):
    """Plain-JAX f32 replica of the PyTorch forward (defaults: no identity/scale)."""
    F = w1.shape[0] // 2
    h = jnp.einsum("bnd,od->bno", x, w1) + b1
    gate, val = h[..., :F], h[..., F:]
    u = jax.nn.silu(gate) * val
    return jnp.einsum("bnf,df->bnd", u, w2) + b2


def _reference_matched(x, params):
    """Reference with the kernel's precision policy (bf16 operands, f32 acc)."""
    B, N, D = x.shape
    xc = x.reshape(B * N, D).astype(params["w1g"].dtype)
    gate = jnp.dot(xc, params["w1g"], preferred_element_type=jnp.float32) + params["b1g"]
    val = jnp.dot(xc, params["w1v"], preferred_element_type=jnp.float32) + params["b1v"]
    hidden = ((gate * jax.nn.sigmoid(gate)) * val).astype(params["w2t"].dtype)
    out = jnp.dot(hidden, params["w2t"], preferred_element_type=jnp.float32) + params["b2"]
    return out.astype(x.dtype).reshape(B, N, D)


# ---------------------------------------------------------------------------
# Demo / self-test
# ---------------------------------------------------------------------------
if __name__ == "__main__":
    # Small shapes consistent with the module; M = 112 gets two token tiles
    # (tm = 56), exercising the parallel M axis on both code paths.
    B, N, D, F = 2, 56, 128, 256

    key = jax.random.PRNGKey(0)
    kx, kw1, kb1, kw2, kb2 = jax.random.split(key, 5)

    x = jax.random.normal(kx, (B, N, D), dtype=jnp.float32)
    # nn.Linear layouts: fc1.weight (2F, D), fc1.bias (2F,), fc2.weight (D, F), fc2.bias (D,)
    w1 = jax.random.normal(kw1, (2 * F, D), dtype=jnp.float32) * (1.0 / D ** 0.5)
    b1 = jax.random.normal(kb1, (2 * F,), dtype=jnp.float32) * 0.01
    w2 = jax.random.normal(kw2, (D, F), dtype=jnp.float32) * (1.0 / F ** 0.5)
    b2 = jax.random.normal(kb2, (D,), dtype=jnp.float32) * 0.01

    # One-time parameter prep (split / transpose / bf16 cast hoisted out of the call path).
    params = prepare_swiglu_params(w1, b1, w2, b2)

    fwd_resident = jax.jit(swiglu_ffn_fused)
    fwd_streaming = jax.jit(functools.partial(swiglu_ffn_fused, force_streaming=True))

    out_res = jax.block_until_ready(fwd_resident(x, params))
    out_str = jax.block_until_ready(fwd_streaming(x, params))

    ref_matched = _reference_matched(x, params)
    ref_f32 = _reference(x, w1, b1, w2, b2)
    for name, out in (("resident", out_res), ("streaming", out_str)):
        assert out.shape == (B, N, D) and out.dtype == x.dtype, name
        assert jnp.allclose(out, ref_matched, atol=2e-2, rtol=2e-2), \
            f"{name}: mismatch vs matched-precision reference"
        assert jnp.allclose(out, ref_f32, atol=1e-1, rtol=1e-1), \
            f"{name}: mismatch vs f32 reference"

    # Ragged token count (M = 50 -> two tiles of 32, last one partial): checks the
    # cdiv grid with clipped partial blocks (no wrapper-side pad/slice).
    x2 = jax.random.normal(jax.random.PRNGKey(1), (1, 50, D), dtype=jnp.float32)
    out2 = jax.block_until_ready(fwd_resident(x2, params))
    assert jnp.allclose(out2, _reference_matched(x2, params), atol=2e-2, rtol=2e-2), \
        "ragged-M mismatch"

    # identity=None and layer_scale=None (layer_scale_init_value=0.0) are the module
    # defaults, so neither appears in the fused kernel.
    print("KERNEL_OK")
</pallas_src>

<mosaic_0001>
module attributes {stable_mosaic.version = 11 : i64} {
  func.func @kernel(%arg0: i32, %arg1: memref<56x128xf32, #tpu.memory_space<vmem>>, %arg2: memref<128x256xbf16, #tpu.memory_space<vmem>>, %arg3: memref<1x256xf32, #tpu.memory_space<vmem>>, %arg4: memref<128x256xbf16, #tpu.memory_space<vmem>>, %arg5: memref<1x256xf32, #tpu.memory_space<vmem>>, %arg6: memref<256x128xbf16, #tpu.memory_space<vmem>>, %arg7: memref<1x128xf32, #tpu.memory_space<vmem>>, %arg8: memref<56x128xf32, #tpu.memory_space<vmem>>) attributes {dimension_semantics = [#tpu.dimension_semantics<parallel>], iteration_bounds = array<i64: 2>, scalar_prefetch = 0 : i64, scratch_operands = 0 : i64, tpu.core_type = #tpu.core_type<tc>, window_params = [{transform_indices = @transform_0, window_bounds = array<i64: 56, 128>}, {pipeline_mode = #tpu.pipeline_mode<synchronous>, transform_indices = @transform_1, window_bounds = array<i64: 128, 256>}, {pipeline_mode = #tpu.pipeline_mode<synchronous>, transform_indices = @transform_2, window_bounds = array<i64: 1, 256>}, {pipeline_mode = #tpu.pipeline_mode<synchronous>, transform_indices = @transform_3, window_bounds = array<i64: 128, 256>}, {pipeline_mode = #tpu.pipeline_mode<synchronous>, transform_indices = @transform_4, window_bounds = array<i64: 1, 256>}, {pipeline_mode = #tpu.pipeline_mode<synchronous>, transform_indices = @transform_5, window_bounds = array<i64: 256, 128>}, {pipeline_mode = #tpu.pipeline_mode<synchronous>, transform_indices = @transform_6, window_bounds = array<i64: 1, 128>}, {transform_indices = @transform_7, window_bounds = array<i64: 56, 128>}]} {
    %c0 = arith.constant 0 : index
    %c0_0 = arith.constant 0 : index
    %0 = vector.load %arg1[%c0, %c0_0] : memref<56x128xf32, #tpu.memory_space<vmem>>, vector<56x128xf32>
    %1 = arith.truncf %0 : vector<56x128xf32> to vector<56x128xbf16>
    %c0_1 = arith.constant 0 : index
    %c0_2 = arith.constant 0 : index
    %2 = vector.load %arg7[%c0_1, %c0_2] : memref<1x128xf32, #tpu.memory_space<vmem>>, vector<1x128xf32>
    %3 = vector.shape_cast %2 : vector<1x128xf32> to vector<1x128xf32>
    %4 = vector.broadcast %3 : vector<1x128xf32> to vector<56x128xf32>
    %c0_3 = arith.constant 0 : index
    %c0_4 = arith.constant 0 : index
    %5 = vector.load %arg8[%c0_3, %c0_4] : memref<56x128xf32, #tpu.memory_space<vmem>>, vector<56x128xf32>
    tpu.vector_store %arg8[%c0_3, %c0_4], %4 {strides = array<i32>} : memref<56x128xf32, #tpu.memory_space<vmem>>, vector<56x128xf32>,
    %c0_5 = arith.constant 0 : index
    %c0_6 = arith.constant 0 : index
    %6 = vector.load %arg2[%c0_5, %c0_6] : memref<128x256xbf16, #tpu.memory_space<vmem>>, vector<128x256xbf16>
    %cst = arith.constant dense<0.000000e+00> : vector<56x256xf32>
    %7 = tpu.matmul %1, %6, %cst {dimension_numbers = #tpu.dot_dimension_numbers<[1], [0], [0], [1], [0, 0, 1, 1], [], []>} : vector<56x128xbf16>, vector<128x256xbf16>, vector<56x256xf32> -> vector<56x256xf32>
    %c0_7 = arith.constant 0 : index
    %c0_8 = arith.constant 0 : index
    %8 = vector.load %arg3[%c0_7, %c0_8] : memref<1x256xf32, #tpu.memory_space<vmem>>, vector<1x256xf32>
    %9 = vector.broadcast %8 : vector<1x256xf32> to vector<56x256xf32>
    %10 = arith.addf %7, %9 : vector<56x256xf32>
    %c0_9 = arith.constant 0 : index
    %c0_10 = arith.constant 0 : index
    %11 = vector.load %arg4[%c0_9, %c0_10] : memref<128x256xbf16, #tpu.memory_space<vmem>>, vector<128x256xbf16>
    %cst_11 = arith.constant dense<0.000000e+00> : vector<56x256xf32>
    %12 = tpu.matmul %1, %11, %cst_11 {dimension_numbers = #tpu.dot_dimension_numbers<[1], [0], [0], [1], [0, 0, 1, 1], [], []>} : vector<56x128xbf16>, vector<128x256xbf16>, vector<56x256xf32> -> vector<56x256xf32>
    %c0_12 = arith.constant 0 : index
    %c0_13 = arith.constant 0 : index
    %13 = vector.load %arg5[%c0_12, %c0_13] : memref<1x256xf32, #tpu.memory_space<vmem>>, vector<1x256xf32>
    %14 = vector.broadcast %13 : vector<1x256xf32> to vector<56x256xf32>
    %15 = arith.addf %12, %14 : vector<56x256xf32>
    %16 = arith.negf %10 : vector<56x256xf32>
    %17 = math.exp %16 : vector<56x256xf32>
    %cst_14 = arith.constant 1.000000e+00 : f32
    %18 = vector.broadcast %cst_14 : f32 to vector<56x256xf32>
    %19 = arith.addf %18, %17 : vector<56x256xf32>
    %20 = arith.divf %18, %19 : vector<56x256xf32>
    %21 = arith.mulf %10, %20 : vector<56x256xf32>
    %22 = arith.mulf %21, %15 : vector<56x256xf32>
    %c0_15 = arith.constant 0 : index
    %c0_16 = arith.constant 0 : index
    %23 = vector.load %arg8[%c0_15, %c0_16] : memref<56x128xf32, #tpu.memory_space<vmem>>, vector<56x128xf32>
    %24 = arith.truncf %22 : vector<56x256xf32> to vector<56x256xbf16>
    %c0_17 = arith.constant 0 : index
    %c0_18 = arith.constant 0 : index
    %25 = vector.load %arg6[%c0_17, %c0_18] : memref<256x128xbf16, #tpu.memory_space<vmem>>, vector<256x128xbf16>
    %cst_19 = arith.constant dense<0.000000e+00> : vector<56x128xf32>
    %26 = tpu.matmul %24, %25, %cst_19 {dimension_numbers = #tpu.dot_dimension_numbers<[1], [0], [0], [1], [0, 0, 1, 1], [], []>} : vector<56x256xbf16>, vector<256x128xbf16>, vector<56x128xf32> -> vector<56x128xf32>
    %27 = arith.addf %23, %26 : vector<56x128xf32>
    %c0_20 = arith.constant 0 : index
    %c0_21 = arith.constant 0 : index
    %28 = vector.load %arg8[%c0_20, %c0_21] : memref<56x128xf32, #tpu.memory_space<vmem>>, vector<56x128xf32>
    tpu.vector_store %arg8[%c0_20, %c0_21], %27 {strides = array<i32>} : memref<56x128xf32, #tpu.memory_space<vmem>>, vector<56x128xf32>,
    return
  }
  func.func @transform_0(%arg0: i32) -> (i32, i32) {
    %c0_i32 = arith.constant 0 : i32
    %c0_i32_0 = arith.constant 0 : i32
    return %arg0, %c0_i32 : i32, i32
  }
  func.func @transform_1(%arg0: i32) -> (i32, i32) {
    %c0_i32 = arith.constant 0 : i32
    %c0_i32_0 = arith.constant 0 : i32
    %c0_i32_1 = arith.constant 0 : i32
    return %c0_i32, %c0_i32_0 : i32, i32
  }
  func.func @transform_2(%arg0: i32) -> (i32, i32) {
    %c0_i32 = arith.constant 0 : i32
    %c0_i32_0 = arith.constant 0 : i32
    %c0_i32_1 = arith.constant 0 : i32
    return %c0_i32, %c0_i32_0 : i32, i32
  }
  func.func @transform_3(%arg0: i32) -> (i32, i32) {
    %c0_i32 = arith.constant 0 : i32
    %c0_i32_0 = arith.constant 0 : i32
    %c0_i32_1 = arith.constant 0 : i32
    return %c0_i32, %c0_i32_0 : i32, i32
  }
  func.func @transform_4(%arg0: i32) -> (i32, i32) {
    %c0_i32 = arith.constant 0 : i32
    %c0_i32_0 = arith.constant 0 : i32
    %c0_i32_1 = arith.constant 0 : i32
    return %c0_i32, %c0_i32_0 : i32, i32
  }
  func.func @transform_5(%arg0: i32) -> (i32, i32) {
    %c0_i32 = arith.constant 0 : i32
    %c0_i32_0 = arith.constant 0 : i32
    %c0_i32_1 = arith.constant 0 : i32
    return %c0_i32, %c0_i32_0 : i32, i32
  }
  func.func @transform_6(%arg0: i32) -> (i32, i32) {
    %c0_i32 = arith.constant 0 : i32
    %c0_i32_0 = arith.constant 0 : i32
    %c0_i32_1 = arith.constant 0 : i32
    return %c0_i32, %c0_i32_0 : i32, i32
  }
  func.func @transform_7(%arg0: i32) -> (i32, i32) {
    %c0_i32 = arith.constant 0 : i32
    %c0_i32_0 = arith.constant 0 : i32
    return %arg0, %c0_i32 : i32, i32
  }
}

</mosaic_0001>

<llo_original>
// kernel: swiglu_ffn_fused.1
$region0: #{swiglu_ffn_fused.1}
  #allocation0 [shape = 'u32[]', space=smem, size = 0x4, offset = 0x4, fixed_abs, tag = 'smem constant byte address 0x4 - core index']
  #allocation1 [shape = 'u32[144,128]{1,0:T(1,128)}', space=vmem, size = 0x12000, scoped, tag = 'internal scratch']
  %s0 = inlined_call_operand.hbm [shape: f32[112,128], index: 0, kind: input, shape index: {}]
  %s1 = inlined_call_operand.hbm [shape: bf16[128,256], index: 1, kind: input, shape index: {}]
  %s2 = inlined_call_operand.vmem [shape: f32[1,256], index: 2, kind: input, shape index: {}]
  %s3 = inlined_call_operand.hbm [shape: bf16[128,256], index: 3, kind: input, shape index: {}]
  %s4 = inlined_call_operand.vmem [shape: f32[1,256], index: 4, kind: input, shape index: {}]
  %s5 = inlined_call_operand.hbm [shape: bf16[256,128], index: 5, kind: input, shape index: {}]
  %s6 = inlined_call_operand.vmem [shape: f32[1,128], index: 6, kind: input, shape index: {}]
  %s7 = inlined_call_operand.hbm [shape: f32[112,128], index: 7, kind: output, shape index: {}]
  %s8 = sld [smem:[#allocation0]]
  $region77: #{swiglu_ffn_fused.1} parent=0
    _
  %s10 = ssub.s32 1, %s8
  %s11 = scalar_select 0, %s10, %s8
  $region1: #{swiglu_ffn_fused.1} parent=0
    #allocation2 [shape = 'u8[57344]{0}', space=vmem, size = 0xe000, scoped, tag = 'input window, operand 0']
    #allocation3 [shape = 's32[2]{0}', space=sflag, size = 0x8, scoped, tag = 'scoped memory for swiglu_ffn_fused.1']
    #allocation4 [shape = 's32[2]{0}', space=sflag, size = 0x8, scoped, tag = 'scoped memory for swiglu_ffn_fused.1']
    #allocation5 [shape = 'u8[65536]{0}', space=vmem, size = 0x10000, scoped, tag = 'input window, operand 1, single buffered']
    #allocation6 [shape = 's32[1]{0}', space=sflag, size = 0x4, scoped, tag = 'scoped memory for swiglu_ffn_fused.1']
    #allocation7 [shape = 'u8[65536]{0}', space=vmem, size = 0x10000, scoped, tag = 'input window, operand 3, single buffered']
    #allocation8 [shape = 'u8[65536]{0}', space=vmem, size = 0x10000, scoped, tag = 'input window, operand 5, single buffered']
    #allocation9 [shape = 's32[1]{0}', space=sflag, size = 0x4, scoped, tag = 'scoped memory for swiglu_ffn_fused.1']
    #allocation10 [shape = 'u8[57344]{0}', space=vmem, size = 0xe000, scoped, tag = 'output window, operand 0']
    %12 = vsyncpa [#allocation3], 0
    %s13 = scalar_lea.sflag [#allocation3], 1
    %14 = vsyncpa %s13, 0
    %15 = vsyncpa [#allocation6], 0
    %16 = vsyncpa [#allocation9], 0
    %17 = vsyncpa [#allocation4], 0
    %s18 = scalar_lea.sflag [#allocation4], 1
    %19 = vsyncpa %s18, 0
    loop: start=0, step=1, limit=4
    $region2: #{swiglu_ffn_fused.1} parent=1 // loop_pre_header
      _
    $region3: #{swiglu_ffn_fused.1} parent=1 // loop_header
      %s21 = sphi 0, %s25
      %p22 = scmp.ge.s32.totalorder %s21, 4
      %s31 = sphi 0, %s33
      %s34 = sphi 0, %s31
      %s35 = sphi 0, %s34
      %s51 = sphi 0, %s35
      %s55 = sphi 0, %s55
      %s57 = sphi 0, %s55
      %s58 = sphi 0, %s57
      %s72 = sphi 0, %s58
      %s76 = sphi 0, %s76
      %s78 = sphi 0, %s76
      %s79 = sphi 0, %s78
      %s93 = sphi 0, %s79
      %s97 = sphi 0, %s97
      %s99 = sphi 0, %s97
      %s100 = sphi 0, %s99
      %s114 = sphi 0, %s100
      %s118 = sphi 0, %s118
      %s120 = sphi 0, %s118
      %s121 = sphi 0, %s120
      %s135 = sphi 0, %s121
      %s139 = sphi 0, %s139
      %s141 = sphi 0, %s139
      %s142 = sphi 0, %s141
      %s156 = sphi 0, %s142
      %s160 = sphi 0, %s160
      %s162 = sphi 0, %s160
      %s163 = sphi 0, %s162
      %s177 = sphi 0, %s163
      %s183 = sphi 0, %s185
      %s186 = sphi 0, %s183
      %s187 = sphi 0, %s186
      %s203 = sphi 0, %s187
    $region4: #{swiglu_ffn_fused.1} parent=1 // loop_header_branch
      %24 = sbr.rel (%p22) target = $region8
    $region5: #{swiglu_ffn_fused.1} parent=1 // loop_body
      %s26 = ssub.s32 %s21, 1
      %s27 = ssub.s32 %s21, 2
      %s28 = sadd.s32 %s21, 1
      %s29 = ssub.s32 %s21, %s28
      %p30 = scmp.eq.s32.totalorder %s29, 0
      %s32 = sadd.s32 %s31, 1
      %s33 = scalar_select %p30, %s31, %s32
      %p36 = pneg %p30
      %p37 = scmp.eq.s32.totalorder %s21, 1
      %p38 = por %p36, %p37
      %p39 = scmp.ne.s32.totalorder %s31, %s34
      %p40 = scmp.eq.s32.totalorder %s21, 0
      %p41 = por %p39, %p40
      %p42 = scmp.ne.s32.totalorder %s31, %s34
      %p43 = scmp.eq.s32.totalorder %s26, 1
      %p44 = por %p42, %p43
      %p45 = scmp.ne.s32.totalorder %s34, %s35
      %p46 = scmp.eq.s32.totalorder %s26, 0
      %p47 = por %p45, %p46
      %p48 = scmp.ne.s32.totalorder %s34, %s35
      %p49 = scmp.eq.s32.totalorder %s27, 1
      %p50 = por %p48, %p49
      %p52 = scmp.ne.s32.totalorder %s35, %s51
      %p53 = scmp.eq.s32.totalorder %s27, 0
      %p54 = por %p52, %p53
      %s56 = sadd.s32 %s55, 1
      %p59 = scmp.eq.s32.totalorder %s21, 1
      %p60 = scmp.ne.s32.totalorder %s55, %s57
      %p61 = scmp.eq.s32.totalorder %s21, 0
      %p62 = por %p60, %p61
      %p63 = scmp.ne.s32.totalorder %s55, %s57
      %p64 = scmp.eq.s32.totalorder %s26, 1
      %p65 = por %p63, %p64
      %p66 = scmp.ne.s32.totalorder %s57, %s58
      %p67 = scmp.eq.s32.totalorder %s26, 0
      %p68 = por %p66, %p67
      %p69 = scmp.ne.s32.totalorder %s57, %s58
      %p70 = scmp.eq.s32.totalorder %s27, 1
      %p71 = por %p69, %p70
      %p73 = scmp.ne.s32.totalorder %s58, %s72
      %p74 = scmp.eq.s32.totalorder %s27, 0
      %p75 = por %p73, %p74
      %s77 = sadd.s32 %s76, 1
      %p80 = scmp.eq.s32.totalorder %s21, 1
      %p81 = scmp.ne.s32.totalorder %s76, %s78
      %p82 = scmp.eq.s32.totalorder %s21, 0
      %p83 = por %p81, %p82
      %p84 = scmp.ne.s32.totalorder %s76, %s78
      %p85 = scmp.eq.s32.totalorder %s26, 1
      %p86 = por %p84, %p85
      %p87 = scmp.ne.s32.totalorder %s78, %s79
      %p88 = scmp.eq.s32.totalorder %s26, 0
      %p89 = por %p87, %p88
      %p90 = scmp.ne.s32.totalorder %s78, %s79
      %p91 = scmp.eq.s32.totalorder %s27, 1
      %p92 = por %p90, %p91
      %p94 = scmp.ne.s32.totalorder %s79, %s93
      %p95 = scmp.eq.s32.totalorder %s27, 0
      %p96 = por %p94, %p95
      %s98 = sadd.s32 %s97, 1
      %p101 = scmp.eq.s32.totalorder %s21, 1
      %p102 = scmp.ne.s32.totalorder %s97, %s99
      %p103 = scmp.eq.s32.totalorder %s21, 0
      %p104 = por %p102, %p103
      %p105 = scmp.ne.s32.totalorder %s97, %s99
      %p106 = scmp.eq.s32.totalorder %s26, 1
      %p107 = por %p105, %p106
      %p108 = scmp.ne.s32.totalorder %s99, %s100
      %p109 = scmp.eq.s32.totalorder %s26, 0
      %p110 = por %p108, %p109
      %p111 = scmp.ne.s32.totalorder %s99, %s100
      %p112 = scmp.eq.s32.totalorder %s27, 1
      %p113 = por %p111, %p112
      %p115 = scmp.ne.s32.totalorder %s100, %s114
      %p116 = scmp.eq.s32.totalorder %s27, 0
      %p117 = por %p115, %p116
      %s119 = sadd.s32 %s118, 1
      %p122 = scmp.eq.s32.totalorder %s21, 1
      %p123 = scmp.ne.s32.totalorder %s118, %s120
      %p124 = scmp.eq.s32.totalorder %s21, 0
      %p125 = por %p123, %p124
      %p126 = scmp.ne.s32.totalorder %s118, %s120
      %p127 = scmp.eq.s32.totalorder %s26, 1
      %p128 = por %p126, %p127
      %p129 = scmp.ne.s32.totalorder %s120, %s121
      %p130 = scmp.eq.s32.totalorder %s26, 0
      %p131 = por %p129, %p130
      %p132 = scmp.ne.s32.totalorder %s120, %s121
      %p133 = scmp.eq.s32.totalorder %s27, 1
      %p134 = por %p132, %p133
      %p136 = scmp.ne.s32.totalorder %s121, %s135
      %p137 = scmp.eq.s32.totalorder %s27, 0
      %p138 = por %p136, %p137
      %s140 = sadd.s32 %s139, 1
      %p143 = scmp.eq.s32.totalorder %s21, 1
      %p144 = scmp.ne.s32.totalorder %s139, %s141
      %p145 = scmp.eq.s32.totalorder %s21, 0
      %p146 = por %p144, %p145
      %p147 = scmp.ne.s32.totalorder %s139, %s141
      %p148 = scmp.eq.s32.totalorder %s26, 1
      %p149 = por %p147, %p148
      %p150 = scmp.ne.s32.totalorder %s141, %s142
      %p151 = scmp.eq.s32.totalorder %s26, 0
      %p152 = por %p150, %p151
      %p153 = scmp.ne.s32.totalorder %s141, %s142
      %p154 = scmp.eq.s32.totalorder %s27, 1
      %p155 = por %p153, %p154
      %p157 = scmp.ne.s32.totalorder %s142, %s156
      %p158 = scmp.eq.s32.totalorder %s27, 0
      %p159 = por %p157, %p158
      %s161 = sadd.s32 %s160, 1
      %p164 = scmp.eq.s32.totalorder %s21, 1
      %p165 = scmp.ne.s32.totalorder %s160, %s162
      %p166 = scmp.eq.s32.totalorder %s21, 0
      %p167 = por %p165, %p166
      %p168 = scmp.ne.s32.totalorder %s160, %s162
      %p169 = scmp.eq.s32.totalorder %s26, 1
      %p170 = por %p168, %p169
      %p171 = scmp.ne.s32.totalorder %s162, %s163
      %p172 = scmp.eq.s32.totalorder %s26, 0
      %p173 = por %p171, %p172
      %p174 = scmp.ne.s32.totalorder %s162, %s163
      %p175 = scmp.eq.s32.totalorder %s27, 1
      %p176 = por %p174, %p175
      %p178 = scmp.ne.s32.totalorder %s163, %s177
      %p179 = scmp.eq.s32.totalorder %s27, 0
      %p180 = por %p178, %p179
      %s181 = ssub.s32 %s21, %s28
      %p182 = scmp.eq.s32.totalorder %s181, 0
      %s184 = sadd.s32 %s183, 1
      %s185 = scalar_select %p182, %s183, %s184
      %p188 = pneg %p182
      %p189 = scmp.eq.s32.totalorder %s21, 1
      %p190 = por %p188, %p189
      %p191 = scmp.ne.s32.totalorder %s183, %s186
      %p192 = scmp.eq.s32.totalorder %s21, 0
      %p193 = por %p191, %p192
      %p194 = scmp.ne.s32.totalorder %s183, %s186
      %p195 = scmp.eq.s32.totalorder %s26, 1
      %p196 = por %p194, %p195
      %p197 = scmp.ne.s32.totalorder %s186, %s187
      %p198 = scmp.eq.s32.totalorder %s26, 0
      %p199 = por %p197, %p198
      %p200 = scmp.ne.s32.totalorder %s186, %s187
      %p201 = scmp.eq.s32.totalorder %s27, 1
      %p202 = por %p200, %p201
      %p204 = scmp.ne.s32.totalorder %s187, %s203
      %p205 = scmp.eq.s32.totalorder %s27, 0
      %p206 = por %p204, %p205
      %p207 = scmp.le.s32.totalorder 1, %s21
      %p208 = scmp.lt.s32.totalorder %s21, 3
      %p209 = pnand %p207, %p208
      %p210 = pneg %p209
      // Predicated region
      $region9: #{swiglu_ffn_fused.1} parent=5 // pred_check
        _
      $region10: #{swiglu_ffn_fused.1} parent=5 // pred_check_branch
        %212 = sbr.rel (%p209) target = $region12
      $region11: #{swiglu_ffn_fused.1} parent=5 // pred_region
        %s213 = ssub.s32 %s21, 1
        // Predicated region
        $region13: #{swiglu_ffn_fused.1} parent=11 // pred_check
          %p214 = pneg %p68
        $region14: #{swiglu_ffn_fused.1} parent=11 // pred_check_branch
          %216 = sbr.rel (%p214) target = $region16
        $region15: #{swiglu_ffn_fused.1} parent=11 // pred_region
          %s218 = ssub.s32 2048, 2048
          %219 = vsyncadd [#allocation6], %s218
          %s220 = sshll.u32 [#allocation5], 4
          %s221 = int_to_ptr.vmem [resolvable:$true] %s220
          %226 = dma.hbm_to_vmem [thread:$0]  %s1, 2048, %s221, [#allocation6], 128, 128, 8
        $region16: #{swiglu_ffn_fused.1} parent=11 // pred_fallthru
          _
        // Predicated region
        $region17: #{swiglu_ffn_fused.1} parent=11 // pred_check
          %p227 = pneg %p89
        $region18: #{swiglu_ffn_fused.1} parent=11 // pred_check_branch
          %229 = sbr.rel (%p227) target = $region20
        $region19: #{swiglu_ffn_fused.1} parent=11 // pred_region
          _
        $region20: #{swiglu_ffn_fused.1} parent=11 // pred_fallthru
          _
        // Predicated region
        $region21: #{swiglu_ffn_fused.1} parent=11 // pred_check
          %p230 = pneg %p110
        $region22: #{swiglu_ffn_fused.1} parent=11 // pred_check_branch
          %232 = sbr.rel (%p230) target = $region24
        $region23: #{swiglu_ffn_fused.1} parent=11 // pred_region
          %s234 = ssub.s32 2048, 2048
          %235 = vsyncadd [#allocation6], %s234
          %s236 = sshll.u32 [#allocation7], 4
          %s237 = int_to_ptr.vmem [resolvable:$true] %s236
          %242 = dma.hbm_to_vmem [thread:$0]  %s3, 2048, %s237, [#allocation6], 128, 128, 8
        $region24: #{swiglu_ffn_fused.1} parent=11 // pred_fallthru
          _
        // Predicated region
        $region25: #{swiglu_ffn_fused.1} parent=11 // pred_check
          %p243 = pneg %p131
        $region26: #{swiglu_ffn_fused.1} parent=11 // pred_check_branch
          %245 = sbr.rel (%p243) target = $region28
        $region27: #{swiglu_ffn_fused.1} parent=11 // pred_region
          _
        $region28: #{swiglu_ffn_fused.1} parent=11 // pred_fallthru
          _
        // Predicated region
        $region29: #{swiglu_ffn_fused.1} parent=11 // pred_check
          %p246 = pneg %p152
        $region30: #{swiglu_ffn_fused.1} parent=11 // pred_check_branch
          %248 = sbr.rel (%p246) target = $region32
        $region31: #{swiglu_ffn_fused.1} parent=11 // pred_region
          %s250 = ssub.s32 2048, 2048
          %251 = vsyncadd [#allocation9], %s250
          %s252 = sshll.u32 [#allocation8], 4
          %s253 = int_to_ptr.vmem [resolvable:$true] %s252
          %258 = dma.hbm_to_vmem [thread:$0]  %s5, 2048, %s253, [#allocation9], 64, 64, 4
        $region32: #{swiglu_ffn_fused.1} parent=11 // pred_fallthru
          _
        // Predicated region
        $region33: #{swiglu_ffn_fused.1} parent=11 // pred_check
          %p259 = pneg %p173
        $region34: #{swiglu_ffn_fused.1} parent=11 // pred_check_branch
          %261 = sbr.rel (%p259) target = $region36
        $region35: #{swiglu_ffn_fused.1} parent=11 // pred_region
          _
        $region36: #{swiglu_ffn_fused.1} parent=11 // pred_fallthru
          _
      $region12: #{swiglu_ffn_fused.1} parent=5 // pred_fallthru
        _
      %p262 = scmp.lt.s32.totalorder %s21, 2
      // Predicated region
      $region37: #{swiglu_ffn_fused.1} parent=5 // pred_check
        %p263 = pneg %p262
      $region38: #{swiglu_ffn_fused.1} parent=5 // pred_check_branch
        %265 = sbr.rel (%p263) target = $region40
      $region39: #{swiglu_ffn_fused.1} parent=5 // pred_region
        // Predicated region
        $region41: #{swiglu_ffn_fused.1} parent=39 // pred_check
          %p266 = pneg %p41
        $region42: #{swiglu_ffn_fused.1} parent=39 // pred_check_branch
          %268 = sbr.rel (%p266) target = $region44
        $region43: #{swiglu_ffn_fused.1} parent=39 // pred_region
          %s269 = sand.u32 %s31, 1
          %s270 = scalar_lea.sflag [#allocation3], %s269
          %s271 = sand.u32 %s31, 1
          %s272 = smul.addr %s271, 56
          %s273 = scalar_lea.vmem [#allocation2], %s272
          %s274 = smul.u32 7, %s21
          %s276 = ssub.s32 896, 896
          %277 = vsyncadd %s270, %s276
          %s278 = smul.addr %s274, 128
          %s279 = scalar_lea.hbm %s0, %s278
          %s280 = sshll.u32 %s273, 4
          %s281 = int_to_ptr.vmem [resolvable:$true] %s280
          %286 = dma.hbm_to_vmem [thread:$0]  %s279, 896, %s281, %s270, 128, 128, 8
        $region44: #{swiglu_ffn_fused.1} parent=39 // pred_fallthru
          _
      $region40: #{swiglu_ffn_fused.1} parent=5 // pred_fallthru
        _
      %p287 = scmp.le.s32.totalorder 1, %s21
      %p288 = scmp.lt.s32.totalorder %s21, 3
      %p289 = pnand %p287, %p288
      %p290 = pneg %p289
      // Predicated region
      $region45: #{swiglu_ffn_fused.1} parent=5 // pred_check
        _
      $region46: #{swiglu_ffn_fused.1} parent=5 // pred_check_branch
        %292 = sbr.rel (%p289) target = $region48
      $region47: #{swiglu_ffn_fused.1} parent=5 // pred_region
        %s293 = ssub.s32 %s21, 1
        %s294 = sand.u32 %s34, 1
        %s295 = scalar_lea.sflag [#allocation3], %s294
        %s296 = sand.u32 %s34, 1
        %s297 = smul.addr %s296, 56
        %s298 = scalar_lea.vmem [#allocation2], %s297
        // Predicated region
        $region49: #{swiglu_ffn_fused.1} parent=47 // pred_check
          %p299 = pneg %p47
        $region50: #{swiglu_ffn_fused.1} parent=47 // pred_check_branch
          %301 = sbr.rel (%p299) target = $region52
        $region51: #{swiglu_ffn_fused.1} parent=47 // pred_region
          %302 = dma.done %s295, 896
        $region52: #{swiglu_ffn_fused.1} parent=47 // pred_fallthru
          _
        // Predicated region
        $region53: #{swiglu_ffn_fused.1} parent=47 // pred_check
          %p303 = pneg %p68
        $region54: #{swiglu_ffn_fused.1} parent=47 // pred_check_branch
          %305 = sbr.rel (%p303) target = $region56
        $region55: #{swiglu_ffn_fused.1} parent=47 // pred_region
          %306 = dma.done [#allocation6], 2048
        $region56: #{swiglu_ffn_fused.1} parent=47 // pred_fallthru
          _
        // Predicated region
        $region57: #{swiglu_ffn_fused.1} parent=47 // pred_check
          %p307 = pneg %p110
        $region58: #{swiglu_ffn_fused.1} parent=47 // pred_check_branch
          %309 = sbr.rel (%p307) target = $region60
        $region59: #{swiglu_ffn_fused.1} parent=47 // pred_region
          %310 = dma.done [#allocation6], 2048
        $region60: #{swiglu_ffn_fused.1} parent=47 // pred_fallthru
          _
        // Predicated region
        $region61: #{swiglu_ffn_fused.1} parent=47 // pred_check
          %p311 = pneg %p152
        $region62: #{swiglu_ffn_fused.1} parent=47 // pred_check_branch
          %313 = sbr.rel (%p311) target = $region64
        $region63: #{swiglu_ffn_fused.1} parent=47 // pred_region
          %314 = dma.done [#allocation9], 2048
        $region64: #{swiglu_ffn_fused.1} parent=47 // pred_fallthru
          _
        %s315 = sand.u32 %s34, 1
        %s316 = scalar_lea.sflag [#allocation3], %s315
        %s317 = sand.u32 %s34, 1
        %s318 = smul.addr %s317, 56
        %s319 = scalar_lea.vmem [#allocation2], %s318
        %p320 = pneg %p47
        %p321 = pneg %p44
        %p322 = pneg %p68
        %p323 = pneg %p65
        %p324 = pneg %p89
        %p325 = pneg %p86
        %p326 = pneg %p110
        %p327 = pneg %p107
        %p328 = pneg %p131
        %p329 = pneg %p128
        %p330 = pneg %p152
        %p331 = pneg %p149
        %p332 = pneg %p173
        %p333 = pneg %p170
        %p334 = pneg %p199
        %p335 = pneg %p196
        %s336 = sand.u32 %s186, 1
        %s337 = scalar_lea.sflag [#allocation4], %s336
        %s338 = sand.u32 %s186, 1
        %s339 = smul.addr %s338, 56
        %s340 = scalar_lea.vmem [#allocation10], %s339
        %s341 = smul.u32 7, %s26
        %s342 = smul.u32 7, %s26
        %v344 = vld [vmem:[%s298] sm:$0xff]
        %v345 = vld [vmem:[%s298 + $0x8] sm:$0xff]
        %v346 = vld [vmem:[%s298 + $0x10] sm:$0xff]
        %v347 = vld [vmem:[%s298 + $0x18] sm:$0xff]
        %v348 = vld [vmem:[%s298 + $0x20] sm:$0xff]
        %v349 = vld [vmem:[%s298 + $0x28] sm:$0xff]
        %v350 = vld [vmem:[%s298 + $0x30] sm:$0xff]
        %v351 = vpack.c.bf16 %v345, %v344
        %v352 = vpack.c.bf16 %v347, %v346
        %v353 = vpack.c.bf16 %v349, %v348
        %v354 = vpack.c.bf16 %v350, %v350
        %v355 = vld [vmem:[%s6] sm:$0x1]
        %v357 = vlaneseq
        %v358 = vshrl.u32 %v357, 7
        %v359 = vsub.s32 0, %v358
        %v360 = vrot.slane %v355, %v359
        %362 = vst [vmem:[%s340] sm:$0xff] %v360
        %363 = vst [vmem:[%s340 + $0x8] sm:$0xff] %v360
        %364 = vst [vmem:[%s340 + $0x10] sm:$0xff] %v360
        %365 = vst [vmem:[%s340 + $0x18] sm:$0xff] %v360
        %366 = vst [vmem:[%s340 + $0x20] sm:$0xff] %v360
        %367 = vst [vmem:[%s340 + $0x28] sm:$0xff] %v360
        %368 = vst [vmem:[%s340 + $0x30] sm:$0xff] %v360
        %v369 = vld [vmem:[#allocation5] sm:$0xff]
        %v370 = vld [vmem:[#allocation5 + $0x8] sm:$0xff]
        %v371 = vld [vmem:[#allocation5 + $0x10] sm:$0xff]
        %v372 = vld [vmem:[#allocation5 + $0x18] sm:$0xff]
        %v373 = vld [vmem:[#allocation5 + $0x20] sm:$0xff]
        %v374 = vld [vmem:[#allocation5 + $0x28] sm:$0xff]
        %v375 = vld [vmem:[#allocation5 + $0x30] sm:$0xff]
        %v376 = vld [vmem:[#allocation5 + $0x38] sm:$0xff]
        %v377 = vld [vmem:[#allocation5 + $0x40] sm:$0xff]
        %v378 = vld [vmem:[#allocation5 + $0x48] sm:$0xff]
        %v379 = vld [vmem:[#allocation5 + $0x50] sm:$0xff]
        %v380 = vld [vmem:[#allocation5 + $0x58] sm:$0xff]
        %v381 = vld [vmem:[#allocation5 + $0x60] sm:$0xff]
        %v382 = vld [vmem:[#allocation5 + $0x68] sm:$0xff]
        %v383 = vld [vmem:[#allocation5 + $0x70] sm:$0xff]
        %v384 = vld [vmem:[#allocation5 + $0x78] sm:$0xff]
        %v385 = vld [vmem:[%s2] sm:$0x3]
        %v387 = vlaneseq
        %v388 = vshrl.u32 %v387, 7
        %v389 = vsub.s32 0, %v388
        %v390 = vrot.slane %v385, %v389
        %v391 = vlaneseq
        %v392 = vshrl.u32 %v391, 7
        %v393 = vsub.s32 1, %v392
        %v394 = vrot.slane %v385, %v393
        %v413 = vunpack.c.l.b16 %v369
        %v414 = vunpack.c.h.b16 %v369
        %v415 = vunpack.c.l.b16 %v370
        %v416 = vunpack.c.h.b16 %v370
        %v417 = vunpack.c.l.b16 %v371
        %v418 = vunpack.c.h.b16 %v371
        %v419 = vunpack.c.l.b16 %v372
        %v420 = vunpack.c.h.b16 %v372
        %v421 = vunpack.c.l.b16 %v373
        %v422 = vunpack.c.h.b16 %v373
        %v423 = vunpack.c.l.b16 %v374
        %v424 = vunpack.c.h.b16 %v374
        %v425 = vunpack.c.l.b16 %v375
        %v426 = vunpack.c.h.b16 %v375
        %v427 = vunpack.c.l.b16 %v376
        %v428 = vunpack.c.h.b16 %v376
        %v429 = vunpack.c.l.b16 %v377
        %v430 = vunpack.c.h.b16 %v377
        %v431 = vunpack.c.l.b16 %v378
        %v432 = vunpack.c.h.b16 %v378
        %v433 = vunpack.c.l.b16 %v379
        %v434 = vunpack.c.h.b16 %v379
        %v435 = vunpack.c.l.b16 %v380
        %v436 = vunpack.c.h.b16 %v380
        %v437 = vunpack.c.l.b16 %v381
        %v438 = vunpack.c.h.b16 %v381
        %v439 = vunpack.c.l.b16 %v382
        %v440 = vunpack.c.h.b16 %v382
        %v441 = vunpack.c.l.b16 %v383
        %v442 = vunpack.c.h.b16 %v383
        %v443 = vunpack.c.l.b16 %v384
        %v444 = vunpack.c.h.b16 %v384
        %v445 = vpack.c.b16 %v415, %v413
        %v446 = vpack.c.b16 %v416, %v414
        %v447 = vpack.c.b16 %v419, %v417
        %v448 = vpack.c.b16 %v420, %v418
        %v449 = vpack.c.b16 %v423, %v421
        %v450 = vpack.c.b16 %v424, %v422
        %v451 = vpack.c.b16 %v427, %v425
        %v452 = vpack.c.b16 %v428, %v426
        %v453 = vpack.c.b16 %v431, %v429
        %v454 = vpack.c.b16 %v432, %v430
        %v455 = vpack.c.b16 %v435, %v433
        %v456 = vpack.c.b16 %v436, %v434
        %v457 = vpack.c.b16 %v439, %v437
        %v458 = vpack.c.b16 %v440, %v438
        %v459 = vpack.c.b16 %v443, %v441
        %v460 = vpack.c.b16 %v444, %v442
        %477 = vmatprep.subr.bf16.mxu0 %v446
        %478 = vmatpush1.bf16.msra.mxu0 %v445
        %479 = vmatprep.subr.bf16.mxu0 %v448
        %480 = vmatpush1.bf16.msra.mxu0 %v447
        %481 = vmatprep.subr.bf16.mxu0 %v450
        %482 = vmatpush1.bf16.msra.mxu0 %v449
        %483 = vmatprep.subr.bf16.mxu0 %v452
        %484 = vmatpush1.bf16.msra.mxu0 %v451
        %485 = vmatprep.subr.bf16.mxu0 %v454
        %486 = vmatpush1.bf16.msra.mxu0 %v453
        %487 = vmatprep.subr.bf16.mxu0 %v456
        %488 = vmatpush1.bf16.msra.mxu0 %v455
        %489 = vmatprep.subr.bf16.mxu0 %v458
        %490 = vmatpush1.bf16.msra.mxu0 %v457
        %491 = vmatprep.subr.bf16.mxu0 %v460
        %492 = vmatpush1.bf16.msra.mxu0 %v459
        %493 = vmatprep.subr.bf16.mxu0 0
        %494 = vmatpush1.bf16.msra.mxu0 0
        %495 = vmatprep.subr.bf16.mxu0 0
        %496 = vmatpush1.bf16.msra.mxu0 0
        %497 = vmatprep.subr.bf16.mxu0 0
        %498 = vmatpush1.bf16.msra.mxu0 0
        %499 = vmatprep.subr.bf16.mxu0 0
        %500 = vmatpush1.bf16.msra.mxu0 0
        %501 = vmatprep.subr.bf16.mxu0 0
        %502 = vmatpush1.bf16.msra.mxu0 0
        %503 = vmatprep.subr.bf16.mxu0 0
        %504 = vmatpush1.bf16.msra.mxu0 0
        %505 = vmatprep.subr.bf16.mxu0 0
        %506 = vmatpush1.bf16.msra.mxu0 0
        %507 = vmatprep.subr.bf16.mxu0 0
        %508 = vmatpush1.bf16.msra.mxu0 0
        %509 = vmatprep.mubr.bf16.mxu0 0
        %510 = vmatmul.mubr.bf16.gmra.mrb[0].mxu0 %v351
        %v511 = vpop.f32.mrb[0].mxu0
        %v512 = vadd.f32 %v390, %v511
        %v513 = vpop.f32.mrb[0].mxu0
        %v514 = vadd.f32 %v394, %v513
        %v515 = vpop.f32.mrb[0].mxu0
        %v516 = vadd.f32 %v390, %v515
        %v517 = vpop.f32.mrb[0].mxu0
        %v518 = vadd.f32 %v394, %v517
        %519 = vmatprep.mubr.bf16.mxu0 0
        %520 = vmatmul.mubr.bf16.gmra.mrb[0].mxu0 %v352
        %v521 = vpop.f32.mrb[0].mxu0
        %v522 = vadd.f32 %v390, %v521
        %v523 = vpop.f32.mrb[0].mxu0
        %v524 = vadd.f32 %v394, %v523
        %v525 = vpop.f32.mrb[0].mxu0
        %v526 = vadd.f32 %v390, %v525
        %v527 = vpop.f32.mrb[0].mxu0
        %v528 = vadd.f32 %v394, %v527
        %529 = vmatprep.mubr.bf16.mxu0 0
        %530 = vmatmul.mubr.bf16.gmra.mrb[0].mxu0 %v353
        %v531 = vpop.f32.mrb[0].mxu0
        %v532 = vadd.f32 %v390, %v531
        %v533 = vpop.f32.mrb[0].mxu0
        %v534 = vadd.f32 %v394, %v533
        %v535 = vpop.f32.mrb[0].mxu0
        %v536 = vadd.f32 %v390, %v535
        %v537 = vpop.f32.mrb[0].mxu0
        %v538 = vadd.f32 %v394, %v537
        %539 = vmatprep.mubr.bf16.mxu0 0
        %540 = vmatmul.mubr.bf16.gmra.mrb[0].mxu0 %v354
        %v541 = vpop.f32.mrb[0].mxu0
        %v542 = vadd.f32 %v390, %v541
        %v543 = vpop.f32.mrb[0].mxu0
        %v544 = vadd.f32 %v394, %v543
        %v545 = vpop.f32.mrb[0].mxu0
        %v546 = vpop.f32.mrb[0].mxu0
        %547 = vdwg.mxu0
        %v548 = vld [vmem:[#allocation7] sm:$0xff]
        %v549 = vld [vmem:[#allocation7 + $0x8] sm:$0xff]
        %v550 = vld [vmem:[#allocation7 + $0x10] sm:$0xff]
        %v551 = vld [vmem:[#allocation7 + $0x18] sm:$0xff]
        %v552 = vld [vmem:[#allocation7 + $0x20] sm:$0xff]
        %v553 = vld [vmem:[#allocation7 + $0x28] sm:$0xff]
        %v554 = vld [vmem:[#allocation7 + $0x30] sm:$0xff]
        %v555 = vld [vmem:[#allocation7 + $0x38] sm:$0xff]
        %v556 = vld [vmem:[#allocation7 + $0x40] sm:$0xff]
        %v557 = vld [vmem:[#allocation7 + $0x48] sm:$0xff]
        %v558 = vld [vmem:[#allocation7 + $0x50] sm:$0xff]
        %v559 = vld [vmem:[#allocation7 + $0x58] sm:$0xff]
        %v560 = vld [vmem:[#allocation7 + $0x60] sm:$0xff]
        %v561 = vld [vmem:[#allocation7 + $0x68] sm:$0xff]
        %v562 = vld [vmem:[#allocation7 + $0x70] sm:$0xff]
        %v563 = vld [vmem:[#allocation7 + $0x78] sm:$0xff]
        %v564 = vld [vmem:[%s4] sm:$0x3]
        %v566 = vlaneseq
        %v567 = vshrl.u32 %v566, 7
        %v568 = vsub.s32 0, %v567
        %v569 = vrot.slane %v564, %v568
        %v570 = vlaneseq
        %v571 = vshrl.u32 %v570, 7
        %v572 = vsub.s32 1, %v571
        %v573 = vrot.slane %v564, %v572
        %v592 = vunpack.c.l.b16 %v548
        %v593 = vunpack.c.h.b16 %v548
        %v594 = vunpack.c.l.b16 %v549
        %v595 = vunpack.c.h.b16 %v549
        %v596 = vunpack.c.l.b16 %v550
        %v597 = vunpack.c.h.b16 %v550
        %v598 = vunpack.c.l.b16 %v551
        %v599 = vunpack.c.h.b16 %v551
        %v600 = vunpack.c.l.b16 %v552
        %v601 = vunpack.c.h.b16 %v552
        %v602 = vunpack.c.l.b16 %v553
        %v603 = vunpack.c.h.b16 %v553
        %v604 = vunpack.c.l.b16 %v554
        %v605 = vunpack.c.h.b16 %v554
        %v606 = vunpack.c.l.b16 %v555
        %v607 = vunpack.c.h.b16 %v555
        %v608 = vunpack.c.l.b16 %v556
        %v609 = vunpack.c.h.b16 %v556
        %v610 = vunpack.c.l.b16 %v557
        %v611 = vunpack.c.h.b16 %v557
        %v612 = vunpack.c.l.b16 %v558
        %v613 = vunpack.c.h.b16 %v558
        %v614 = vunpack.c.l.b16 %v559
        %v615 = vunpack.c.h.b16 %v559
        %v616 = vunpack.c.l.b16 %v560
        %v617 = vunpack.c.h.b16 %v560
        %v618 = vunpack.c.l.b16 %v561
        %v619 = vunpack.c.h.b16 %v561
        %v620 = vunpack.c.l.b16 %v562
        %v621 = vunpack.c.h.b16 %v562
        %v622 = vunpack.c.l.b16 %v563
        %v623 = vunpack.c.h.b16 %v563
        %v624 = vpack.c.b16 %v594, %v592
        %v625 = vpack.c.b16 %v595, %v593
        %v626 = vpack.c.b16 %v598, %v596
        %v627 = vpack.c.b16 %v599, %v597
        %v628 = vpack.c.b16 %v602, %v600
        %v629 = vpack.c.b16 %v603, %v601
        %v630 = vpack.c.b16 %v606, %v604
        %v631 = vpack.c.b16 %v607, %v605
        %v632 = vpack.c.b16 %v610, %v608
        %v633 = vpack.c.b16 %v611, %v609
        %v634 = vpack.c.b16 %v614, %v612
        %v635 = vpack.c.b16 %v615, %v613
        %v636 = vpack.c.b16 %v618, %v616
        %v637 = vpack.c.b16 %v619, %v617
        %v638 = vpack.c.b16 %v622, %v620
        %v639 = vpack.c.b16 %v623, %v621
        %656 = vmatprep.subr.bf16.mxu0 %v625
        %657 = vmatpush1.bf16.msra.mxu0 %v624
        %658 = vmatprep.subr.bf16.mxu0 %v627
        %659 = vmatpush1.bf16.msra.mxu0 %v626
        %660 = vmatprep.subr.bf16.mxu0 %v629
        %661 = vmatpush1.bf16.msra.mxu0 %v628
        %662 = vmatprep.subr.bf16.mxu0 %v631
        %663 = vmatpush1.bf16.msra.mxu0 %v630
        %664 = vmatprep.subr.bf16.mxu0 %v633
        %665 = vmatpush1.bf16.msra.mxu0 %v632
        %666 = vmatprep.subr.bf16.mxu0 %v635
        %667 = vmatpush1.bf16.msra.mxu0 %v634
        %668 = vmatprep.subr.bf16.mxu0 %v637
        %669 = vmatpush1.bf16.msra.mxu0 %v636
        %670 = vmatprep.subr.bf16.mxu0 %v639
        %671 = vmatpush1.bf16.msra.mxu0 %v638
        %672 = vmatprep.subr.bf16.mxu0 0
        %673 = vmatpush1.bf16.msra.mxu0 0
        %674 = vmatprep.subr.bf16.mxu0 0
        %675 = vmatpush1.bf16.msra.mxu0 0
        %676 = vmatprep.subr.bf16.mxu0 0
        %677 = vmatpush1.bf16.msra.mxu0 0
        %678 = vmatprep.subr.bf16.mxu0 0
        %679 = vmatpush1.bf16.msra.mxu0 0
        %680 = vmatprep.subr.bf16.mxu0 0
        %681 = vmatpush1.bf16.msra.mxu0 0
        %682 = vmatprep.subr.bf16.mxu0 0
        %683 = vmatpush1.bf16.msra.mxu0 0
        %684 = vmatprep.subr.bf16.mxu0 0
        %685 = vmatpush1.bf16.msra.mxu0 0
        %686 = vmatprep.subr.bf16.mxu0 0
        %687 = vmatpush1.bf16.msra.mxu0 0
        %688 = vmatprep.mubr.bf16.mxu0 0
        %689 = vmatmul.mubr.bf16.gmra.mrb[0].mxu0 %v351
        %v690 = vpop.f32.mrb[0].mxu0
        %v691 = vadd.f32 %v569, %v690
        %v692 = vpop.f32.mrb[0].mxu0
        %v693 = vadd.f32 %v573, %v692
        %v694 = vpop.f32.mrb[0].mxu0
        %v695 = vadd.f32 %v569, %v694
        %v696 = vpop.f32.mrb[0].mxu0
        %v697 = vadd.f32 %v573, %v696
        %698 = vmatprep.mubr.bf16.mxu0 0
        %699 = vmatmul.mubr.bf16.gmra.mrb[0].mxu0 %v352
        %v700 = vpop.f32.mrb[0].mxu0
        %v701 = vadd.f32 %v569, %v700
        %v702 = vpop.f32.mrb[0].mxu0
        %v703 = vadd.f32 %v573, %v702
        %v704 = vpop.f32.mrb[0].mxu0
        %v705 = vadd.f32 %v569, %v704
        %v706 = vpop.f32.mrb[0].mxu0
        %v707 = vadd.f32 %v573, %v706
        %708 = vmatprep.mubr.bf16.mxu0 0
        %709 = vmatmul.mubr.bf16.gmra.mrb[0].mxu0 %v353
        %v710 = vpop.f32.mrb[0].mxu0
        %v711 = vadd.f32 %v569, %v710
        %v712 = vpop.f32.mrb[0].mxu0
        %v713 = vadd.f32 %v573, %v712
        %v714 = vpop.f32.mrb[0].mxu0
        %v715 = vadd.f32 %v569, %v714
        %v716 = vpop.f32.mrb[0].mxu0
        %v717 = vadd.f32 %v573, %v716
        %718 = vmatprep.mubr.bf16.mxu0 0
        %719 = vmatmul.mubr.bf16.gmra.mrb[0].mxu0 %v354
        %v720 = vpop.f32.mrb[0].mxu0
        %v721 = vadd.f32 %v569, %v720
        %v722 = vpop.f32.mrb[0].mxu0
        %v723 = vadd.f32 %v573, %v722
        %v724 = vpop.f32.mrb[0].mxu0
        %v725 = vpop.f32.mrb[0].mxu0
        %726 = vdwg.mxu0
        %v727 = vxor.u32 %v512, 2147483648
        %v728 = vxor.u32 %v514, 2147483648
        %v729 = vxor.u32 %v516, 2147483648
        %v730 = vxor.u32 %v518, 2147483648
        %v731 = vxor.u32 %v522, 2147483648
        %v732 = vxor.u32 %v524, 2147483648
        %v733 = vxor.u32 %v526, 2147483648
        %v734 = vxor.u32 %v528, 2147483648
        %v735 = vxor.u32 %v532, 2147483648
        %v736 = vxor.u32 %v534, 2147483648
        %v737 = vxor.u32 %v536, 2147483648
        %v738 = vxor.u32 %v538, 2147483648
        %v739 = vxor.u32 %v542, 2147483648
        %v740 = vxor.u32 %v544, 2147483648
        %v741 = vmul.f32 %v727, 1.442695
        %v742 = vpow.pop %v741
        %v743 = vmul.f32 %v728, 1.442695
        %v744 = vpow.pop %v743
        %v745 = vmul.f32 %v729, 1.442695
        %v746 = vpow.pop %v745
        %v747 = vmul.f32 %v730, 1.442695
        %v748 = vpow.pop %v747
        %v749 = vmul.f32 %v731, 1.442695
        %v750 = vpow.pop %v749
        %v751 = vmul.f32 %v732, 1.442695
        %v752 = vpow.pop %v751
        %v753 = vmul.f32 %v733, 1.442695
        %v754 = vpow.pop %v753
        %v755 = vmul.f32 %v734, 1.442695
        %v756 = vpow.pop %v755
        %v757 = vmul.f32 %v735, 1.442695
        %v758 = vpow.pop %v757
        %v759 = vmul.f32 %v736, 1.442695
        %v760 = vpow.pop %v759
        %v761 = vmul.f32 %v737, 1.442695
        %v762 = vpow.pop %v761
        %v763 = vmul.f32 %v738, 1.442695
        %v764 = vpow.pop %v763
        %v765 = vmul.f32 %v739, 1.442695
        %v766 = vpow.pop %v765
        %v767 = vmul.f32 %v740, 1.442695
        %v768 = vpow.pop %v767
        %v769 = vadd.f32 %v742, 1.0
        %v770 = vadd.f32 %v744, 1.0
        %v771 = vadd.f32 %v746, 1.0
        %v772 = vadd.f32 %v748, 1.0
        %v773 = vadd.f32 %v750, 1.0
        %v774 = vadd.f32 %v752, 1.0
        %v775 = vadd.f32 %v754, 1.0
        %v776 = vadd.f32 %v756, 1.0
        %v777 = vadd.f32 %v758, 1.0
        %v778 = vadd.f32 %v760, 1.0
        %v779 = vadd.f32 %v762, 1.0
        %v780 = vadd.f32 %v764, 1.0
        %v781 = vadd.f32 %v766, 1.0
        %v782 = vadd.f32 %v768, 1.0
        %v783 = vrcp.pop %v769
        %v784 = vmul.f32 1.0, %v783
        %v785 = vrcp.pop %v770
        %v786 = vmul.f32 1.0, %v785
        %v787 = vrcp.pop %v771
        %v788 = vmul.f32 1.0, %v787
        %v789 = vrcp.pop %v772
        %v790 = vmul.f32 1.0, %v789
        %v791 = vrcp.pop %v773
        %v792 = vmul.f32 1.0, %v791
        %v793 = vrcp.pop %v774
        %v794 = vmul.f32 1.0, %v793
        %v795 = vrcp.pop %v775
        %v796 = vmul.f32 1.0, %v795
        %v797 = vrcp.pop %v776
        %v798 = vmul.f32 1.0, %v797
        %v799 = vrcp.pop %v777
        %v800 = vmul.f32 1.0, %v799
        %v801 = vrcp.pop %v778
        %v802 = vmul.f32 1.0, %v801
        %v803 = vrcp.pop %v779
        %v804 = vmul.f32 1.0, %v803
        %v805 = vrcp.pop %v780
        %v806 = vmul.f32 1.0, %v805
        %v807 = vrcp.pop %v781
        %v808 = vmul.f32 1.0, %v807
        %v809 = vrcp.pop %v782
        %v810 = vmul.f32 1.0, %v809
        %v811 = vmul.f32 %v512, %v784
        %v812 = vmul.f32 %v514, %v786
        %v813 = vmul.f32 %v516, %v788
        %v814 = vmul.f32 %v518, %v790
        %v815 = vmul.f32 %v522, %v792
        %v816 = vmul.f32 %v524, %v794
        %v817 = vmul.f32 %v526, %v796
        %v818 = vmul.f32 %v528, %v798
        %v819 = vmul.f32 %v532, %v800
        %v820 = vmul.f32 %v534, %v802
        %v821 = vmul.f32 %v536, %v804
        %v822 = vmul.f32 %v538, %v806
        %v823 = vmul.f32 %v542, %v808
        %v824 = vmul.f32 %v544, %v810
        %v825 = vmul.f32 %v811, %v691
        %v826 = vmul.f32 %v812, %v693
        %v827 = vmul.f32 %v813, %v695
        %v828 = vmul.f32 %v814, %v697
        %v829 = vmul.f32 %v815, %v701
        %v830 = vmul.f32 %v816, %v703
        %v831 = vmul.f32 %v817, %v705
        %v832 = vmul.f32 %v818, %v707
        %v833 = vmul.f32 %v819, %v711
        %v834 = vmul.f32 %v820, %v713
        %v835 = vmul.f32 %v821, %v715
        %v836 = vmul.f32 %v822, %v717
        %v837 = vmul.f32 %v823, %v721
        %v838 = vmul.f32 %v824, %v723
        %v839 = vld [vmem:[%s340] sm:$0xff]
        %v840 = vld [vmem:[%s340 + $0x8] sm:$0xff]
        %v841 = vld [vmem:[%s340 + $0x10] sm:$0xff]
        %v842 = vld [vmem:[%s340 + $0x18] sm:$0xff]
        %v843 = vld [vmem:[%s340 + $0x20] sm:$0xff]
        %v844 = vld [vmem:[%s340 + $0x28] sm:$0xff]
        %v845 = vld [vmem:[%s340 + $0x30] sm:$0xff]
        %v846 = vpack.c.bf16 %v827, %v825
        %v847 = vpack.c.bf16 %v828, %v826
        %v848 = vpack.c.bf16 %v831, %v829
        %v849 = vpack.c.bf16 %v832, %v830
        %v850 = vpack.c.bf16 %v835, %v833
        %v851 = vpack.c.bf16 %v836, %v834
        %v852 = vpack.c.bf16 %v837, %v837
        %v853 = vpack.c.bf16 %v838, %v838
        %v854 = vld [vmem:[#allocation8] sm:$0xf]
        %v855 = vld [vmem:[#allocation8 + $0x4] sm:$0xf]
        %v856 = vld [vmem:[#allocation8 + $0x8] sm:$0xf]
        %v857 = vld [vmem:[#allocation8 + $0xc] sm:$0xf]
        %v858 = vld [vmem:[#allocation8 + $0x10] sm:$0xf]
        %v859 = vld [vmem:[#allocation8 + $0x14] sm:$0xf]
        %v860 = vld [vmem:[#allocation8 + $0x18] sm:$0xf]
        %v861 = vld [vmem:[#allocation8 + $0x1c] sm:$0xf]
        %v862 = vld [vmem:[#allocation8 + $0x20] sm:$0xf]
        %v863 = vld [vmem:[#allocation8 + $0x24] sm:$0xf]
        %v864 = vld [vmem:[#allocation8 + $0x28] sm:$0xf]
        %v865 = vld [vmem:[#allocation8 + $0x2c] sm:$0xf]
        %v866 = vld [vmem:[#allocation8 + $0x30] sm:$0xf]
        %v867 = vld [vmem:[#allocation8 + $0x34] sm:$0xf]
        %v868 = vld [vmem:[#allocation8 + $0x38] sm:$0xf]
        %v869 = vld [vmem:[#allocation8 + $0x3c] sm:$0xf]
        %v870 = vld [vmem:[#allocation8 + $0x40] sm:$0xf]
        %v871 = vld [vmem:[#allocation8 + $0x44] sm:$0xf]
        %v872 = vld [vmem:[#allocation8 + $0x48] sm:$0xf]
        %v873 = vld [vmem:[#allocation8 + $0x4c] sm:$0xf]
        %v874 = vld [vmem:[#allocation8 + $0x50] sm:$0xf]
        %v875 = vld [vmem:[#allocation8 + $0x54] sm:$0xf]
        %v876 = vld [vmem:[#allocation8 + $0x58] sm:$0xf]
        %v877 = vld [vmem:[#allocation8 + $0x5c] sm:$0xf]
        %v878 = vld [vmem:[#allocation8 + $0x60] sm:$0xf]
        %v879 = vld [vmem:[#allocation8 + $0x64] sm:$0xf]
        %v880 = vld [vmem:[#allocation8 + $0x68] sm:$0xf]
        %v881 = vld [vmem:[#allocation8 + $0x6c] sm:$0xf]
        %v882 = vld [vmem:[#allocation8 + $0x70] sm:$0xf]
        %v883 = vld [vmem:[#allocation8 + $0x74] sm:$0xf]
        %v884 = vld [vmem:[#allocation8 + $0x78] sm:$0xf]
        %v885 = vld [vmem:[#allocation8 + $0x7c] sm:$0xf]
        %v918 = vunpack.c.l.b16 %v854
        %v919 = vunpack.c.l.b16 %v855
        %v920 = vunpack.c.l.b16 %v856
        %v921 = vunpack.c.l.b16 %v857
        %v922 = vunpack.c.l.b16 %v858
        %v923 = vunpack.c.l.b16 %v859
        %v924 = vunpack.c.l.b16 %v860
        %v925 = vunpack.c.l.b16 %v861
        %v926 = vunpack.c.l.b16 %v862
        %v927 = vunpack.c.l.b16 %v863
        %v928 = vunpack.c.l.b16 %v864
        %v929 = vunpack.c.l.b16 %v865
        %v930 = vunpack.c.l.b16 %v866
        %v931 = vunpack.c.l.b16 %v867
        %v932 = vunpack.c.l.b16 %v868
        %v933 = vunpack.c.l.b16 %v869
        %v934 = vunpack.c.l.b16 %v870
        %v935 = vunpack.c.l.b16 %v871
        %v936 = vunpack.c.l.b16 %v872
        %v937 = vunpack.c.l.b16 %v873
        %v938 = vunpack.c.l.b16 %v874
        %v939 = vunpack.c.l.b16 %v875
        %v940 = vunpack.c.l.b16 %v876
        %v941 = vunpack.c.l.b16 %v877
        %v942 = vunpack.c.l.b16 %v878
        %v943 = vunpack.c.l.b16 %v879
        %v944 = vunpack.c.l.b16 %v880
        %v945 = vunpack.c.l.b16 %v881
        %v946 = vunpack.c.l.b16 %v882
        %v947 = vunpack.c.l.b16 %v883
        %v948 = vunpack.c.l.b16 %v884
        %v949 = vunpack.c.l.b16 %v885
        %v950 = vpack.c.b16 %v919, %v918
        %v951 = vpack.c.b16 %v921, %v920
        %v952 = vpack.c.b16 %v923, %v922
        %v953 = vpack.c.b16 %v925, %v924
        %v954 = vpack.c.b16 %v927, %v926
        %v955 = vpack.c.b16 %v929, %v928
        %v956 = vpack.c.b16 %v931, %v930
        %v957 = vpack.c.b16 %v933, %v932
        %v958 = vpack.c.b16 %v935, %v934
        %v959 = vpack.c.b16 %v937, %v936
        %v960 = vpack.c.b16 %v939, %v938
        %v961 = vpack.c.b16 %v941, %v940
        %v962 = vpack.c.b16 %v943, %v942
        %v963 = vpack.c.b16 %v945, %v944
        %v964 = vpack.c.b16 %v947, %v946
        %v965 = vpack.c.b16 %v949, %v948
        %982 = vmatprep.subr.bf16.mxu0 0
        %983 = vmatpush1.bf16.msra.mxu0 %v950
        %984 = vmatprep.subr.bf16.mxu0 0
        %985 = vmatpush1.bf16.msra.mxu0 %v951
        %986 = vmatprep.subr.bf16.mxu0 0
        %987 = vmatpush1.bf16.msra.mxu0 %v952
        %988 = vmatprep.subr.bf16.mxu0 0
        %989 = vmatpush1.bf16.msra.mxu0 %v953
        %990 = vmatprep.subr.bf16.mxu0 0
        %991 = vmatpush1.bf16.msra.mxu0 %v954
        %992 = vmatprep.subr.bf16.mxu0 0
        %993 = vmatpush1.bf16.msra.mxu0 %v955
        %994 = vmatprep.subr.bf16.mxu0 0
        %995 = vmatpush1.bf16.msra.mxu0 %v956
        %996 = vmatprep.subr.bf16.mxu0 0
        %997 = vmatpush1.bf16.msra.mxu0 %v957
        %998 = vmatprep.subr.bf16.mxu0 0
        %999 = vmatpush1.bf16.msra.mxu0 %v958
        %1000 = vmatprep.subr.bf16.mxu0 0
        %1001 = vmatpush1.bf16.msra.mxu0 %v959
        %1002 = vmatprep.subr.bf16.mxu0 0
        %1003 = vmatpush1.bf16.msra.mxu0 %v960
        %1004 = vmatprep.subr.bf16.mxu0 0
        %1005 = vmatpush1.bf16.msra.mxu0 %v961
        %1006 = vmatprep.subr.bf16.mxu0 0
        %1007 = vmatpush1.bf16.msra.mxu0 %v962
        %1008 = vmatprep.subr.bf16.mxu0 0
        %1009 = vmatpush1.bf16.msra.mxu0 %v963
        %1010 = vmatprep.subr.bf16.mxu0 0
        %1011 = vmatpush1.bf16.msra.mxu0 %v964
        %1012 = vmatprep.subr.bf16.mxu0 0
        %1013 = vmatpush1.bf16.msra.mxu0 %v965
        %1014 = vmatprep.mubr.bf16.mxu0 %v847
        %1015 = vmatmul.mubr.bf16.gmra.mrb[0].mxu0 %v846
        %v1016 = vpop.f32.mrb[0].mxu0
        %v1017 = vadd.f32 0.0, %v1016
        %v1018 = vpop.f32.mrb[0].mxu0
        %v1019 = vpop.f32.mrb[0].mxu0
        %v1020 = vadd.f32 0.0, %v1019
        %v1021 = vpop.f32.mrb[0].mxu0
        %1022 = vmatprep.mubr.bf16.mxu0 %v849
        %1023 = vmatmul.mubr.bf16.gmra.mrb[0].mxu0 %v848
        %v1024 = vpop.f32.mrb[0].mxu0
        %v1025 = vadd.f32 0.0, %v1024
        %v1026 = vpop.f32.mrb[0].mxu0
        %v1027 = vpop.f32.mrb[0].mxu0
        %v1028 = vadd.f32 0.0, %v1027
        %v1029 = vpop.f32.mrb[0].mxu0
        %1030 = vmatprep.mubr.bf16.mxu0 %v851
        %1031 = vmatmul.mubr.bf16.gmra.mrb[0].mxu0 %v850
        %v1032 = vpop.f32.mrb[0].mxu0
        %v1033 = vadd.f32 0.0, %v1032
        %v1034 = vpop.f32.mrb[0].mxu0
        %v1035 = vpop.f32.mrb[0].mxu0
        %v1036 = vadd.f32 0.0, %v1035
        %v1037 = vpop.f32.mrb[0].mxu0
        %1038 = vmatprep.mubr.bf16.mxu0 %v853
        %1039 = vmatmul.mubr.bf16.gmra.mrb[0].mxu0 %v852
        %v1040 = vpop.f32.mrb[0].mxu0
        %v1041 = vadd.f32 0.0, %v1040
        %v1042 = vpop.f32.mrb[0].mxu0
        %v1043 = vpop.f32.mrb[0].mxu0
        %v1044 = vpop.f32.mrb[0].mxu0
        %1045 = vdwg.mxu0
        %v1046 = vadd.f32 %v839, %v1017
        %v1047 = vadd.f32 %v840, %v1020
        %v1048 = vadd.f32 %v841, %v1025
        %v1049 = vadd.f32 %v842, %v1028
        %v1050 = vadd.f32 %v843, %v1033
        %v1051 = vadd.f32 %v844, %v1036
        %v1052 = vadd.f32 %v845, %v1041
        %1053 = vst [vmem:[%s340] sm:$0xff] %v1046
        %1054 = vst [vmem:[%s340 + $0x8] sm:$0xff] %v1047
        %1055 = vst [vmem:[%s340 + $0x10] sm:$0xff] %v1048
        %1056 = vst [vmem:[%s340 + $0x18] sm:$0xff] %v1049
        %1057 = vst [vmem:[%s340 + $0x20] sm:$0xff] %v1050
        %1058 = vst [vmem:[%s340 + $0x28] sm:$0xff] %v1051
        %1059 = vst [vmem:[%s340 + $0x30] sm:$0xff] %v1052
        %s1060 = sand.u32 %s186, 1
        %s1061 = scalar_lea.sflag [#allocation4], %s1060
        %s1062 = sand.u32 %s186, 1
        %s1063 = smul.addr %s1062, 56
        %s1064 = scalar_lea.vmem [#allocation10], %s1063
        // Predicated region
        $region65: #{swiglu_ffn_fused.1} parent=47 // pred_check
          %p1065 = pneg %p196
        $region66: #{swiglu_ffn_fused.1} parent=47 // pred_check_branch
          %1067 = sbr.rel (%p1065) target = $region68
        $region67: #{swiglu_ffn_fused.1} parent=47 // pred_region
          %s1068 = smul.u32 7, %s26
          %s1070 = ssub.s32 896, 896
          %1071 = vsyncadd %s1061, %s1070
          %s1072 = smul.addr %s1068, 128
          %s1073 = scalar_lea.hbm %s7, %s1072
          %s1074 = sshll.u32 %s1064, 4
          %s1075 = int_to_ptr.vmem [resolvable:$true] %s1074
          %1080 = dma.vmem_to_hbm [thread:$0]  %s1075, 896, %s1073, %s1061, 128, 128, 8
        $region68: #{swiglu_ffn_fused.1} parent=47 // pred_fallthru
          _
      $region48: #{swiglu_ffn_fused.1} parent=5 // pred_fallthru
        _
      %p1081 = scmp.le.s32.totalorder 2, %s21
      // Predicated region
      $region69: #{swiglu_ffn_fused.1} parent=5 // pred_check
        %p1082 = pneg %p1081
      $region70: #{swiglu_ffn_fused.1} parent=5 // pred_check_branch
        %1084 = sbr.rel (%p1082) target = $region72
      $region71: #{swiglu_ffn_fused.1} parent=5 // pred_region
        %s1085 = ssub.s32 %s21, 2
        // Predicated region
        $region73: #{swiglu_ffn_fused.1} parent=71 // pred_check
          %p1086 = pneg %p202
        $region74: #{swiglu_ffn_fused.1} parent=71 // pred_check_branch
          %1088 = sbr.rel (%p1086) target = $region76
        $region75: #{swiglu_ffn_fused.1} parent=71 // pred_region
          %s1089 = sand.u32 %s187, 1
          %s1090 = scalar_lea.sflag [#allocation4], %s1089
          %s1091 = sand.u32 %s187, 1
          %s1092 = smul.addr %s1091, 56
          %s1093 = scalar_lea.vmem [#allocation10], %s1092
          %1094 = dma.done %s1090, 896
        $region76: #{swiglu_ffn_fused.1} parent=71 // pred_fallthru
          _
      $region72: #{swiglu_ffn_fused.1} parent=5 // pred_fallthru
        _
    $region6: #{swiglu_ffn_fused.1} parent=1 // loop_footer
      %s25 = sadd.s32 1, %s21
    $region7: #{swiglu_ffn_fused.1} parent=1 // loop_footer_branch
      %20 = sbr.rel target = $region3
    $region8: #{swiglu_ffn_fused.1} parent=1 // loop_exit
      _
    %1095 = vsyncpa [#allocation3], 1
    %s1096 = scalar_lea.sflag [#allocation3], 1
    %1097 = vsyncpa %s1096, 1
    %1098 = vsyncpa [#allocation6], 1
    %1099 = vsyncpa [#allocation9], 1
    %1100 = vsyncpa [#allocation4], 1
    %s1101 = scalar_lea.sflag [#allocation4], 1
    %1102 = vsyncpa %s1101, 1

</llo_original>
